<compile_context>
chip_gen: v5e
topology: v5e:2x2
jax: 0.10.0
libtpu: 0.0.40
codegen_flags: <defaults>
</compile_context>

<pallas_src>
import functools

import jax
import jax.numpy as jnp
from jax.experimental import pallas as pl
from jax.experimental.pallas import tpu as pltpu

EPS = 1e-5    # nn.BatchNorm1d default eps
LANE = 128    # TPU lane width


# ----------------------------------------------------------------------------
# small helpers
# ----------------------------------------------------------------------------
def _round_up(n, m):
    return ((n + m - 1) // m) * m


def _pad_axis(a, axis, new_size):
    pad = [(0, 0)] * a.ndim
    pad[axis] = (0, new_size - a.shape[axis])
    return jnp.pad(a, pad)


def _pad_last(a, new_size):
    return _pad_axis(a, a.ndim - 1, new_size)


def _vmem_limit_bytes(B, in_p, h_p, d2_p, w_bytes, x_bytes):
    """Rough VMEM footprint estimate for the fused kernel (+ margin)."""
    acts = B * in_p * w_bytes + B * d2_p * x_bytes + B * d2_p * 4   # xc, x2, y2
    weights = (in_p * h_p + h_p * h_p + h_p * d2_p) * w_bytes + (4 * h_p + d2_p) * 4
    temps = 4 * B * h_p * 4                     # a few live f32 (B, h_p) temporaries
    est = acts + 2 * weights + temps            # per-layer inputs double-buffered
    return int(min(64 * 2 ** 20, max(8 * 2 ** 20, 2 * est)))


# ----------------------------------------------------------------------------
# Fused Pallas kernel: one grid step == one coupling layer.
#   y2_ref (f32, constant block index -> VMEM-resident) carries the running
#   x2 accumulator across the whole layer stack.
# ----------------------------------------------------------------------------
def _cinn_stack_kernel(sign, inv_b,
                       xc_ref, x2_ref,
                       w1_ref, g1_ref, be1_ref,
                       w2_ref, g2_ref, be2_ref,
                       w3_ref, b3_ref,
                       y2_ref):
    layer = pl.program_id(0)

    @pl.when(layer == 0)
    def _init():
        y2_ref[...] = x2_ref[...].astype(jnp.float32)

    def bn_relu(h, g_ref, be_ref):
        # training-mode BatchNorm1d (biased batch variance), one-pass stats,
        # folded into a single scale/shift, then ReLU.
        mu = jnp.sum(h, axis=0, keepdims=True) * inv_b
        ex2 = jnp.sum(h * h, axis=0, keepdims=True) * inv_b
        var = jnp.maximum(ex2 - mu * mu, 0.0)
        scale = g_ref[...] * jax.lax.rsqrt(var + EPS)
        return jnp.maximum(h * scale + (be_ref[...] - mu * scale), 0.0)

    # Linear1 + BN1 + ReLU (bias omitted: cancelled by BN mean subtraction).
    h = jnp.dot(xc_ref[...], w1_ref[...], preferred_element_type=jnp.float32)
    h = bn_relu(h, g1_ref, be1_ref)

    # Linear2 + BN2 + ReLU.
    h = jnp.dot(h.astype(w2_ref.dtype), w2_ref[...],
                preferred_element_type=jnp.float32)
    h = bn_relu(h, g2_ref, be2_ref)

    # Linear3 -> t, additive coupling update accumulated directly in the
    # resident f32 output block (standard accumulator pattern).
    t = jnp.dot(h.astype(w3_ref.dtype), w3_ref[...],
                preferred_element_type=jnp.float32) + b3_ref[...]
    y2_ref[...] = y2_ref[...] + sign * t


# ----------------------------------------------------------------------------
# Parameter packing: stack over layers, pad feature dims to lane width,
# cast matmul weights to the MXU dtype.
# ----------------------------------------------------------------------------
def pack_cinn_params(layer_params, weight_dtype=jnp.bfloat16):
    stack = lambda i: jnp.stack([p[i] for p in layer_params])
    w1, b1, g1, be1, w2, b2, g2, be2, w3, b3 = (stack(i) for i in range(10))
    # b1 / b2 dropped: training-mode BN right after each Linear subtracts the
    # batch mean, which removes any per-feature constant bias exactly.
    del b1, b2

    L, in_dim, hidden = w1.shape
    d2 = w3.shape[2]
    in_p = _round_up(in_dim, LANE)
    h_p = _round_up(hidden, LANE)
    d2_p = _round_up(d2, LANE)

    return dict(
        w1=_pad_last(_pad_axis(w1, 1, in_p), h_p).astype(weight_dtype),
        g1=_pad_last(g1, h_p).astype(jnp.float32),
        be1=_pad_last(be1, h_p).astype(jnp.float32),
        w2=_pad_last(_pad_axis(w2, 1, h_p), h_p).astype(weight_dtype),
        g2=_pad_last(g2, h_p).astype(jnp.float32),
        be2=_pad_last(be2, h_p).astype(jnp.float32),
        w3=_pad_last(_pad_axis(w3, 1, h_p), d2_p).astype(weight_dtype),
        b3=_pad_last(b3, d2_p).astype(jnp.float32),
        dims=dict(num_layers=L, in_dim=in_dim, hidden=hidden, d2=d2,
                  in_p=in_p, h_p=h_p, d2_p=d2_p),
    )


# ----------------------------------------------------------------------------
# CINN.forward: whole layer stack in one fused kernel.
# ----------------------------------------------------------------------------
def cinn_forward(x, c, packed, reverse=False):
    d = packed["dims"]
    B, dim = x.shape
    d2 = d["d2"]
    assert dim == 2 * d2, "feature dim must match packed params"
    assert c.shape == (B, d["in_dim"] - d2), "conditional dim mismatch"

    x1, x2 = x[:, :d2], x[:, d2:]
    xc = jnp.concatenate([x1, c], axis=1)   # hoisted once for all layers

    w_dtype = packed["w1"].dtype
    xc_p = _pad_last(xc, d["in_p"]).astype(w_dtype)   # MXU operand dtype
    x2_p = _pad_last(x2, d["d2_p"])                   # stays in x dtype

    L = d["num_layers"]
    sign = -1.0 if reverse else 1.0
    if reverse:
        per_layer = lambda l: (L - 1 - l, 0, 0)
    else:
        per_layer = lambda l: (l, 0, 0)
    resident = lambda l: (0, 0)     # same block every layer -> stays in VMEM

    vmem_limit = _vmem_limit_bytes(B, d["in_p"], d["h_p"], d["d2_p"],
                                   jnp.dtype(w_dtype).itemsize,
                                   jnp.dtype(x.dtype).itemsize)

    y2_p = pl.pallas_call(
        functools.partial(_cinn_stack_kernel, sign, 1.0 / B),
        out_shape=jax.ShapeDtypeStruct((B, d["d2_p"]), jnp.float32),
        grid=(L,),
        in_specs=[
            pl.BlockSpec((B, d["in_p"]), resident),                # xc
            pl.BlockSpec((B, d["d2_p"]), resident),                # x2
            pl.BlockSpec((None, d["in_p"], d["h_p"]), per_layer),  # w1
            pl.BlockSpec((None, 1, d["h_p"]), per_layer),          # g1
            pl.BlockSpec((None, 1, d["h_p"]), per_layer),          # be1
            pl.BlockSpec((None, d["h_p"], d["h_p"]), per_layer),   # w2
            pl.BlockSpec((None, 1, d["h_p"]), per_layer),          # g2
            pl.BlockSpec((None, 1, d["h_p"]), per_layer),          # be2
            pl.BlockSpec((None, d["h_p"], d["d2_p"]), per_layer),  # w3
            pl.BlockSpec((None, 1, d["d2_p"]), per_layer),         # b3
        ],
        out_specs=pl.BlockSpec((B, d["d2_p"]), resident),
        compiler_params=pltpu.CompilerParams(
            dimension_semantics=("arbitrary",),   # layer axis is sequential
            vmem_limit_bytes=vmem_limit,
        ),
    )(xc_p, x2_p, packed["w1"], packed["g1"], packed["be1"],
      packed["w2"], packed["g2"], packed["be2"], packed["w3"], packed["b3"])

    # TODO(synk): for very large B*hidden (v7x 64 MiB VMEM / megacore) add a
    # batch-tile grid axis with a two-pass cross-tile BatchNorm reduction;
    # unnecessary at these sizes.
    return jnp.concatenate([x1, y2_p[:, :d2].astype(x.dtype)], axis=1)


# ----------------------------------------------------------------------------
# Deterministic PyTorch-style parameter init (weights as (in, out) for x @ W).
# ----------------------------------------------------------------------------
def init_linear(key, fan_in, fan_out, dtype=jnp.float32):
    kw, kb = jax.random.split(key)
    bound = 1.0 / (fan_in ** 0.5)
    w = jax.random.uniform(kw, (fan_in, fan_out), dtype, -bound, bound)
    b = jax.random.uniform(kb, (1, fan_out), dtype, -bound, bound)
    return w, b


def init_cinn_params(key, dim, conditional_dim, num_layers, hidden_dim,
                     dtype=jnp.float32):
    d2 = dim // 2
    in_dim = d2 + conditional_dim
    layer_params = []
    for _ in range(num_layers):
        key, k1, k2, k3 = jax.random.split(key, 4)
        w1, b1 = init_linear(k1, in_dim, hidden_dim, dtype)
        w2, b2 = init_linear(k2, hidden_dim, hidden_dim, dtype)
        w3, b3 = init_linear(k3, hidden_dim, d2, dtype)
        g1 = jnp.ones((1, hidden_dim), dtype)    # BN gamma (default 1)
        be1 = jnp.zeros((1, hidden_dim), dtype)  # BN beta  (default 0)
        g2 = jnp.ones((1, hidden_dim), dtype)
        be2 = jnp.zeros((1, hidden_dim), dtype)
        layer_params.append((w1, b1, g1, be1, w2, b2, g2, be2, w3, b3))
    return layer_params


# ----------------------------------------------------------------------------
# Pure-JAX, spec-faithful reference (keeps b1/b2, two-pass biased variance).
# ----------------------------------------------------------------------------
def _ref_coupling(x, c, params, reverse=False):
    w1, b1, g1, be1, w2, b2, g2, be2, w3, b3 = params
    d2 = x.shape[1] // 2
    x1, x2 = x[:, :d2], x[:, d2:]

    def bn(h, g, be):
        mu = h.mean(0, keepdims=True)
        var = ((h - mu) ** 2).mean(0, keepdims=True)  # biased, training mode
        return (h - mu) / jnp.sqrt(var + EPS) * g + be

    h = jnp.maximum(bn(jnp.concatenate([x1, c], axis=1) @ w1 + b1, g1, be1), 0.0)
    h = jnp.maximum(bn(h @ w2 + b2, g2, be2), 0.0)
    t = h @ w3 + b3
    y2 = x2 - t if reverse else x2 + t
    return jnp.concatenate([x1, y2], axis=1)


def _ref_cinn(x, c, layer_params, reverse=False):
    lp = list(reversed(layer_params)) if reverse else layer_params
    for p in lp:
        x = _ref_coupling(x, c, p, reverse)
    return x


if __name__ == "__main__":
    # Small shapes consistent with CINN(dim, conditional_dim, num_layers, hidden_dim)
    dim, conditional_dim, num_layers, hidden_dim = 8, 4, 2, 32
    batch = 8  # >1 required for training-mode BatchNorm1d statistics

    key = jax.random.PRNGKey(0)
    kx, kc, kp = jax.random.split(key, 3)
    x = jax.random.normal(kx, (batch, dim), jnp.float32)
    c = jax.random.normal(kc, (batch, conditional_dim), jnp.float32)
    layer_params = init_cinn_params(kp, dim, conditional_dim, num_layers, hidden_dim)

    y_ref = _ref_cinn(x, c, layer_params, reverse=False)

    # f32 weights: tight check against the spec-faithful reference.
    packed_f32 = pack_cinn_params(layer_params, weight_dtype=jnp.float32)
    y_f32 = jax.block_until_ready(cinn_forward(x, c, packed_f32, reverse=False))
    assert y_f32.shape == (batch, dim)
    assert jnp.allclose(y_f32, y_ref, rtol=1e-3, atol=1e-3), "f32 kernel mismatch"

    # bf16 matmul operands (MXU fast path) with f32 accumulation / BN math.
    packed_bf16 = pack_cinn_params(layer_params, weight_dtype=jnp.bfloat16)
    y_bf16 = jax.block_until_ready(cinn_forward(x, c, packed_bf16, reverse=False))
    assert jnp.allclose(y_bf16, y_ref, rtol=1e-1, atol=1e-1), "bf16 kernel mismatch"

    # Reverse pass must invert the forward pass (t is recomputed identically).
    x_rec = jax.block_until_ready(cinn_forward(y_bf16, c, packed_bf16, reverse=True))
    assert jnp.allclose(x_rec, x, rtol=1e-3, atol=1e-3), "reverse did not invert forward"

    print("KERNEL_OK")
</pallas_src>

<mosaic_0001>
module attributes {stable_mosaic.version = 11 : i64} {
  func.func @_cinn_stack_kernel(%arg0: i32, %arg1: memref<8x128xf32, #tpu.memory_space<vmem>>, %arg2: memref<8x128xf32, #tpu.memory_space<vmem>>, %arg3: memref<1x128x128xf32, #tpu.memory_space<vmem>>, %arg4: memref<1x1x128xf32, #tpu.memory_space<vmem>>, %arg5: memref<1x1x128xf32, #tpu.memory_space<vmem>>, %arg6: memref<1x128x128xf32, #tpu.memory_space<vmem>>, %arg7: memref<1x1x128xf32, #tpu.memory_space<vmem>>, %arg8: memref<1x1x128xf32, #tpu.memory_space<vmem>>, %arg9: memref<1x128x128xf32, #tpu.memory_space<vmem>>, %arg10: memref<1x1x128xf32, #tpu.memory_space<vmem>>, %arg11: memref<8x128xf32, #tpu.memory_space<vmem>>) attributes {dimension_semantics = [#tpu.dimension_semantics<arbitrary>], iteration_bounds = array<i64: 2>, scalar_prefetch = 0 : i64, scratch_operands = 0 : i64, tpu.core_type = #tpu.core_type<tc>, window_params = [{pipeline_mode = #tpu.pipeline_mode<synchronous>, transform_indices = @transform_0, window_bounds = array<i64: 8, 128>}, {pipeline_mode = #tpu.pipeline_mode<synchronous>, transform_indices = @transform_1, window_bounds = array<i64: 8, 128>}, {transform_indices = @transform_2, window_bounds = array<i64: 1, 128, 128>}, {transform_indices = @transform_3, window_bounds = array<i64: 1, 1, 128>}, {transform_indices = @transform_4, window_bounds = array<i64: 1, 1, 128>}, {transform_indices = @transform_5, window_bounds = array<i64: 1, 128, 128>}, {transform_indices = @transform_6, window_bounds = array<i64: 1, 1, 128>}, {transform_indices = @transform_7, window_bounds = array<i64: 1, 1, 128>}, {transform_indices = @transform_8, window_bounds = array<i64: 1, 128, 128>}, {transform_indices = @transform_9, window_bounds = array<i64: 1, 1, 128>}, {pipeline_mode = #tpu.pipeline_mode<synchronous>, transform_indices = @transform_10, window_bounds = array<i64: 8, 128>}]} {
    %c0_i32 = arith.constant 0 : i32
    %0 = arith.cmpi eq, %arg0, %c0_i32 : i32
    %1 = arith.extui %0 : i1 to i32
    %c0_i32_0 = arith.constant 0 : i32
    %2 = arith.cmpi ne, %1, %c0_i32_0 : i32
    scf.if %2 {
      %c0_47 = arith.constant 0 : index
      %c0_48 = arith.constant 0 : index
      %80 = vector.load %arg2[%c0_47, %c0_48] : memref<8x128xf32, #tpu.memory_space<vmem>>, vector<8x128xf32>
      %c0_49 = arith.constant 0 : index
      %c0_50 = arith.constant 0 : index
      %81 = vector.load %arg11[%c0_49, %c0_50] : memref<8x128xf32, #tpu.memory_space<vmem>>, vector<8x128xf32>
      tpu.vector_store %arg11[%c0_49, %c0_50], %80 {strides = array<i32>} : memref<8x128xf32, #tpu.memory_space<vmem>>, vector<8x128xf32>,
    } else {
    }
    %c0 = arith.constant 0 : index
    %c0_1 = arith.constant 0 : index
    %3 = vector.load %arg1[%c0, %c0_1] : memref<8x128xf32, #tpu.memory_space<vmem>>, vector<8x128xf32>
    %c0_2 = arith.constant 0 : index
    %c0_3 = arith.constant 0 : index
    %c0_4 = arith.constant 0 : index
    %4 = vector.load %arg3[%c0_2, %c0_3, %c0_4] : memref<1x128x128xf32, #tpu.memory_space<vmem>>, vector<1x128x128xf32>
    %5 = vector.shape_cast %4 : vector<1x128x128xf32> to vector<128x128xf32>
    %cst = arith.constant dense<0.000000e+00> : vector<8x128xf32>
    %6 = tpu.matmul %3, %5, %cst {dimension_numbers = #tpu.dot_dimension_numbers<[1], [0], [0], [1], [0, 0, 1, 1], [], []>} : vector<8x128xf32>, vector<128x128xf32>, vector<8x128xf32> -> vector<8x128xf32>
    %cst_5 = arith.constant dense<0.000000e+00> : vector<128xf32>
    %7 = vector.multi_reduction <add>, %6, %cst_5 [0] : vector<8x128xf32> to vector<128xf32>
    %8 = vector.shape_cast %7 : vector<128xf32> to vector<1x128xf32>
    %cst_6 = arith.constant 1.250000e-01 : f32
    %9 = vector.broadcast %cst_6 : f32 to vector<1x128xf32>
    %10 = arith.mulf %8, %9 : vector<1x128xf32>
    %11 = arith.mulf %6, %6 : vector<8x128xf32>
    %cst_7 = arith.constant dense<0.000000e+00> : vector<128xf32>
    %12 = vector.multi_reduction <add>, %11, %cst_7 [0] : vector<8x128xf32> to vector<128xf32>
    %13 = vector.shape_cast %12 : vector<128xf32> to vector<1x128xf32>
    %cst_8 = arith.constant 1.250000e-01 : f32
    %14 = vector.broadcast %cst_8 : f32 to vector<1x128xf32>
    %15 = arith.mulf %13, %14 : vector<1x128xf32>
    %16 = arith.mulf %10, %10 : vector<1x128xf32>
    %17 = arith.subf %15, %16 : vector<1x128xf32>
    %cst_9 = arith.constant 0.000000e+00 : f32
    %18 = vector.broadcast %cst_9 : f32 to vector<1x128xf32>
    %19 = arith.maximumf %17, %18 : vector<1x128xf32>
    %c0_10 = arith.constant 0 : index
    %c0_11 = arith.constant 0 : index
    %c0_12 = arith.constant 0 : index
    %20 = vector.load %arg4[%c0_10, %c0_11, %c0_12] : memref<1x1x128xf32, #tpu.memory_space<vmem>>, vector<1x1x128xf32>
    %21 = vector.shape_cast %20 : vector<1x1x128xf32> to vector<1x128xf32>
    %cst_13 = arith.constant 9.99999974E-6 : f32
    %22 = vector.broadcast %cst_13 : f32 to vector<1x128xf32>
    %23 = arith.addf %19, %22 : vector<1x128xf32>
    %24 = math.rsqrt %23 : vector<1x128xf32>
    %25 = arith.mulf %21, %24 : vector<1x128xf32>
    %26 = vector.broadcast %25 : vector<1x128xf32> to vector<8x128xf32>
    %27 = arith.mulf %6, %26 : vector<8x128xf32>
    %c0_14 = arith.constant 0 : index
    %c0_15 = arith.constant 0 : index
    %c0_16 = arith.constant 0 : index
    %28 = vector.load %arg5[%c0_14, %c0_15, %c0_16] : memref<1x1x128xf32, #tpu.memory_space<vmem>>, vector<1x1x128xf32>
    %29 = vector.shape_cast %28 : vector<1x1x128xf32> to vector<1x128xf32>
    %30 = arith.mulf %10, %25 : vector<1x128xf32>
    %31 = arith.subf %29, %30 : vector<1x128xf32>
    %32 = vector.broadcast %31 : vector<1x128xf32> to vector<8x128xf32>
    %33 = arith.addf %27, %32 : vector<8x128xf32>
    %cst_17 = arith.constant 0.000000e+00 : f32
    %34 = vector.broadcast %cst_17 : f32 to vector<8x128xf32>
    %35 = arith.maximumf %33, %34 : vector<8x128xf32>
    %c0_18 = arith.constant 0 : index
    %c0_19 = arith.constant 0 : index
    %c0_20 = arith.constant 0 : index
    %36 = vector.load %arg6[%c0_18, %c0_19, %c0_20] : memref<1x128x128xf32, #tpu.memory_space<vmem>>, vector<1x128x128xf32>
    %37 = vector.shape_cast %36 : vector<1x128x128xf32> to vector<128x128xf32>
    %cst_21 = arith.constant dense<0.000000e+00> : vector<8x128xf32>
    %38 = tpu.matmul %35, %37, %cst_21 {dimension_numbers = #tpu.dot_dimension_numbers<[1], [0], [0], [1], [0, 0, 1, 1], [], []>} : vector<8x128xf32>, vector<128x128xf32>, vector<8x128xf32> -> vector<8x128xf32>
    %cst_22 = arith.constant dense<0.000000e+00> : vector<128xf32>
    %39 = vector.multi_reduction <add>, %38, %cst_22 [0] : vector<8x128xf32> to vector<128xf32>
    %40 = vector.shape_cast %39 : vector<128xf32> to vector<1x128xf32>
    %cst_23 = arith.constant 1.250000e-01 : f32
    %41 = vector.broadcast %cst_23 : f32 to vector<1x128xf32>
    %42 = arith.mulf %40, %41 : vector<1x128xf32>
    %43 = arith.mulf %38, %38 : vector<8x128xf32>
    %cst_24 = arith.constant dense<0.000000e+00> : vector<128xf32>
    %44 = vector.multi_reduction <add>, %43, %cst_24 [0] : vector<8x128xf32> to vector<128xf32>
    %45 = vector.shape_cast %44 : vector<128xf32> to vector<1x128xf32>
    %cst_25 = arith.constant 1.250000e-01 : f32
    %46 = vector.broadcast %cst_25 : f32 to vector<1x128xf32>
    %47 = arith.mulf %45, %46 : vector<1x128xf32>
    %48 = arith.mulf %42, %42 : vector<1x128xf32>
    %49 = arith.subf %47, %48 : vector<1x128xf32>
    %cst_26 = arith.constant 0.000000e+00 : f32
    %50 = vector.broadcast %cst_26 : f32 to vector<1x128xf32>
    %51 = arith.maximumf %49, %50 : vector<1x128xf32>
    %c0_27 = arith.constant 0 : index
    %c0_28 = arith.constant 0 : index
    %c0_29 = arith.constant 0 : index
    %52 = vector.load %arg7[%c0_27, %c0_28, %c0_29] : memref<1x1x128xf32, #tpu.memory_space<vmem>>, vector<1x1x128xf32>
    %53 = vector.shape_cast %52 : vector<1x1x128xf32> to vector<1x128xf32>
    %cst_30 = arith.constant 9.99999974E-6 : f32
    %54 = vector.broadcast %cst_30 : f32 to vector<1x128xf32>
    %55 = arith.addf %51, %54 : vector<1x128xf32>
    %56 = math.rsqrt %55 : vector<1x128xf32>
    %57 = arith.mulf %53, %56 : vector<1x128xf32>
    %58 = vector.broadcast %57 : vector<1x128xf32> to vector<8x128xf32>
    %59 = arith.mulf %38, %58 : vector<8x128xf32>
    %c0_31 = arith.constant 0 : index
    %c0_32 = arith.constant 0 : index
    %c0_33 = arith.constant 0 : index
    %60 = vector.load %arg8[%c0_31, %c0_32, %c0_33] : memref<1x1x128xf32, #tpu.memory_space<vmem>>, vector<1x1x128xf32>
    %61 = vector.shape_cast %60 : vector<1x1x128xf32> to vector<1x128xf32>
    %62 = arith.mulf %42, %57 : vector<1x128xf32>
    %63 = arith.subf %61, %62 : vector<1x128xf32>
    %64 = vector.broadcast %63 : vector<1x128xf32> to vector<8x128xf32>
    %65 = arith.addf %59, %64 : vector<8x128xf32>
    %cst_34 = arith.constant 0.000000e+00 : f32
    %66 = vector.broadcast %cst_34 : f32 to vector<8x128xf32>
    %67 = arith.maximumf %65, %66 : vector<8x128xf32>
    %c0_35 = arith.constant 0 : index
    %c0_36 = arith.constant 0 : index
    %c0_37 = arith.constant 0 : index
    %68 = vector.load %arg9[%c0_35, %c0_36, %c0_37] : memref<1x128x128xf32, #tpu.memory_space<vmem>>, vector<1x128x128xf32>
    %69 = vector.shape_cast %68 : vector<1x128x128xf32> to vector<128x128xf32>
    %cst_38 = arith.constant dense<0.000000e+00> : vector<8x128xf32>
    %70 = tpu.matmul %67, %69, %cst_38 {dimension_numbers = #tpu.dot_dimension_numbers<[1], [0], [0], [1], [0, 0, 1, 1], [], []>} : vector<8x128xf32>, vector<128x128xf32>, vector<8x128xf32> -> vector<8x128xf32>
    %c0_39 = arith.constant 0 : index
    %c0_40 = arith.constant 0 : index
    %c0_41 = arith.constant 0 : index
    %71 = vector.load %arg10[%c0_39, %c0_40, %c0_41] : memref<1x1x128xf32, #tpu.memory_space<vmem>>, vector<1x1x128xf32>
    %72 = vector.shape_cast %71 : vector<1x1x128xf32> to vector<1x128xf32>
    %73 = vector.broadcast %72 : vector<1x128xf32> to vector<8x128xf32>
    %74 = arith.addf %70, %73 : vector<8x128xf32>
    %c0_42 = arith.constant 0 : index
    %c0_43 = arith.constant 0 : index
    %75 = vector.load %arg11[%c0_42, %c0_43] : memref<8x128xf32, #tpu.memory_space<vmem>>, vector<8x128xf32>
    %cst_44 = arith.constant 1.000000e+00 : f32
    %76 = vector.broadcast %cst_44 : f32 to vector<8x128xf32>
    %77 = arith.mulf %76, %74 : vector<8x128xf32>
    %78 = arith.addf %75, %77 : vector<8x128xf32>
    %c0_45 = arith.constant 0 : index
    %c0_46 = arith.constant 0 : index
    %79 = vector.load %arg11[%c0_45, %c0_46] : memref<8x128xf32, #tpu.memory_space<vmem>>, vector<8x128xf32>
    tpu.vector_store %arg11[%c0_45, %c0_46], %78 {strides = array<i32>} : memref<8x128xf32, #tpu.memory_space<vmem>>, vector<8x128xf32>,
    return
  }
  func.func @transform_0(%arg0: i32) -> (i32, i32) {
    %c0_i32 = arith.constant 0 : i32
    %c0_i32_0 = arith.constant 0 : i32
    %c0_i32_1 = arith.constant 0 : i32
    return %c0_i32, %c0_i32_0 : i32, i32
  }
  func.func @transform_1(%arg0: i32) -> (i32, i32) {
    %c0_i32 = arith.constant 0 : i32
    %c0_i32_0 = arith.constant 0 : i32
    %c0_i32_1 = arith.constant 0 : i32
    return %c0_i32, %c0_i32_0 : i32, i32
  }
  func.func @transform_2(%arg0: i32) -> (i32, i32, i32) {
    %c0_i32 = arith.constant 0 : i32
    %c0_i32_0 = arith.constant 0 : i32
    %c0_i32_1 = arith.constant 0 : i32
    return %arg0, %c0_i32, %c0_i32_0 : i32, i32, i32
  }
  func.func @transform_3(%arg0: i32) -> (i32, i32, i32) {
    %c0_i32 = arith.constant 0 : i32
    %c0_i32_0 = arith.constant 0 : i32
    %c0_i32_1 = arith.constant 0 : i32
    return %arg0, %c0_i32, %c0_i32_0 : i32, i32, i32
  }
  func.func @transform_4(%arg0: i32) -> (i32, i32, i32) {
    %c0_i32 = arith.constant 0 : i32
    %c0_i32_0 = arith.constant 0 : i32
    %c0_i32_1 = arith.constant 0 : i32
    return %arg0, %c0_i32, %c0_i32_0 : i32, i32, i32
  }
  func.func @transform_5(%arg0: i32) -> (i32, i32, i32) {
    %c0_i32 = arith.constant 0 : i32
    %c0_i32_0 = arith.constant 0 : i32
    %c0_i32_1 = arith.constant 0 : i32
    return %arg0, %c0_i32, %c0_i32_0 : i32, i32, i32
  }
  func.func @transform_6(%arg0: i32) -> (i32, i32, i32) {
    %c0_i32 = arith.constant 0 : i32
    %c0_i32_0 = arith.constant 0 : i32
    %c0_i32_1 = arith.constant 0 : i32
    return %arg0, %c0_i32, %c0_i32_0 : i32, i32, i32
  }
  func.func @transform_7(%arg0: i32) -> (i32, i32, i32) {
    %c0_i32 = arith.constant 0 : i32
    %c0_i32_0 = arith.constant 0 : i32
    %c0_i32_1 = arith.constant 0 : i32
    return %arg0, %c0_i32, %c0_i32_0 : i32, i32, i32
  }
  func.func @transform_8(%arg0: i32) -> (i32, i32, i32) {
    %c0_i32 = arith.constant 0 : i32
    %c0_i32_0 = arith.constant 0 : i32
    %c0_i32_1 = arith.constant 0 : i32
    return %arg0, %c0_i32, %c0_i32_0 : i32, i32, i32
  }
  func.func @transform_9(%arg0: i32) -> (i32, i32, i32) {
    %c0_i32 = arith.constant 0 : i32
    %c0_i32_0 = arith.constant 0 : i32
    %c0_i32_1 = arith.constant 0 : i32
    return %arg0, %c0_i32, %c0_i32_0 : i32, i32, i32
  }
  func.func @transform_10(%arg0: i32) -> (i32, i32) {
    %c0_i32 = arith.constant 0 : i32
    %c0_i32_0 = arith.constant 0 : i32
    %c0_i32_1 = arith.constant 0 : i32
    return %c0_i32, %c0_i32_0 : i32, i32
  }
}

</mosaic_0001>

<llo_original>
// kernel: tpu_custom_call.1
$region0: #{tpu_custom_call.1}
  #allocation0 [shape = 'u32[]', space=smem, size = 0x4, offset = 0x4, fixed_abs, tag = 'smem constant byte address 0x4 - core index']
  #allocation1 [shape = 'u32[72,128]{1,0:T(1,128)}', space=vmem, size = 0x9000, scoped, tag = 'internal scratch']
  %s0 = inlined_call_operand.hbm [shape: f32[8,128], index: 0, kind: input, shape index: {}]
  %s1 = inlined_call_operand.hbm [shape: f32[8,128], index: 1, kind: input, shape index: {}]
  %s2 = inlined_call_operand.hbm [shape: f32[2,128,128], index: 2, kind: input, shape index: {}]
  %s3 = inlined_call_operand.vmem [shape: f32[2,1,128], index: 3, kind: input, shape index: {}]
  %s4 = inlined_call_operand.hbm [shape: f32[2,1,128], index: 4, kind: input, shape index: {}]
  %s5 = inlined_call_operand.hbm [shape: f32[2,128,128], index: 5, kind: input, shape index: {}]
  %s6 = inlined_call_operand.vmem [shape: f32[2,1,128], index: 6, kind: input, shape index: {}]
  %s7 = inlined_call_operand.vmem [shape: f32[2,1,128], index: 7, kind: input, shape index: {}]
  %s8 = inlined_call_operand.hbm [shape: f32[2,128,128], index: 8, kind: input, shape index: {}]
  %s9 = inlined_call_operand.vmem [shape: f32[2,1,128], index: 9, kind: input, shape index: {}]
  %s10 = inlined_call_operand.hbm [shape: f32[8,128], index: 10, kind: output, shape index: {}]
  %s11 = sld [smem:[#allocation0]]
  $region101: #{tpu_custom_call.1} parent=0
    _
  %s13 = ssub.s32 1, %s11
  %s14 = scalar_select 0, %s13, %s11
  $region1: #{tpu_custom_call.1} parent=0
    #allocation2 [shape = 'u8[4096]{0}', space=vmem, size = 0x1000, scoped, tag = 'input window, operand 0, single buffered']
    #allocation3 [shape = 's32[2]{0}', space=sflag, size = 0x8, scoped, tag = 'scoped memory for tpu_custom_call.1']
    #allocation4 [shape = 's32[2]{0}', space=sflag, size = 0x8, scoped, tag = 'scoped memory for tpu_custom_call.1']
    #allocation5 [shape = 'u8[4096]{0}', space=vmem, size = 0x1000, scoped, tag = 'input window, operand 1, single buffered']
    #allocation6 [shape = 's32[1]{0}', space=sflag, size = 0x4, scoped, tag = 'scoped memory for tpu_custom_call.1']
    #allocation7 [shape = 'u8[131072]{0}', space=vmem, size = 0x20000, scoped, tag = 'input window, operand 2']
    #allocation8 [shape = 'u8[1024]{0}', space=vmem, size = 0x400, scoped, tag = 'input window, operand 4']
    #allocation9 [shape = 'u8[131072]{0}', space=vmem, size = 0x20000, scoped, tag = 'input window, operand 5']
    #allocation10 [shape = 'u8[131072]{0}', space=vmem, size = 0x20000, scoped, tag = 'input window, operand 8']
    #allocation11 [shape = 'u8[4096]{0}', space=vmem, size = 0x1000, scoped, tag = 'output window, operand 0, single buffered']
    %15 = vsyncpa [#allocation3], 0
    %16 = vsyncpa [#allocation6], 0
    %17 = vsyncpa [#allocation4], 0
    loop: start=0, step=1, limit=4
    $region2: #{tpu_custom_call.1} parent=1 // loop_pre_header
      _
    $region3: #{tpu_custom_call.1} parent=1 // loop_header
      %s19 = sphi 0, %s23
      %p20 = scmp.ge.s32.totalorder %s19, 4
      %s27 = sphi 0, %s27
      %s29 = sphi 0, %s27
      %s30 = sphi 0, %s29
      %s44 = sphi 0, %s30
      %s48 = sphi 0, %s48
      %s50 = sphi 0, %s48
      %s51 = sphi 0, %s50
      %s65 = sphi 0, %s51
      %s71 = sphi 0, %s73
      %s74 = sphi 0, %s71
      %s75 = sphi 0, %s74
      %s91 = sphi 0, %s75
      %s97 = sphi 0, %s99
      %s100 = sphi 0, %s97
      %s101 = sphi 0, %s100
      %s117 = sphi 0, %s101
      %s123 = sphi 0, %s125
      %s126 = sphi 0, %s123
      %s127 = sphi 0, %s126
      %s143 = sphi 0, %s127
      %s149 = sphi 0, %s151
      %s152 = sphi 0, %s149
      %s153 = sphi 0, %s152
      %s169 = sphi 0, %s153
      %s175 = sphi 0, %s177
      %s178 = sphi 0, %s175
      %s179 = sphi 0, %s178
      %s195 = sphi 0, %s179
      %s201 = sphi 0, %s203
      %s204 = sphi 0, %s201
      %s205 = sphi 0, %s204
      %s221 = sphi 0, %s205
      %s227 = sphi 0, %s229
      %s230 = sphi 0, %s227
      %s231 = sphi 0, %s230
      %s247 = sphi 0, %s231
      %s253 = sphi 0, %s255
      %s256 = sphi 0, %s253
      %s257 = sphi 0, %s256
      %s273 = sphi 0, %s257
      %s277 = sphi 0, %s277
      %s279 = sphi 0, %s277
      %s280 = sphi 0, %s279
      %s294 = sphi 0, %s280
    $region4: #{tpu_custom_call.1} parent=1 // loop_header_branch
      %22 = sbr.rel (%p20) target = $region8
    $region5: #{tpu_custom_call.1} parent=1 // loop_body
      %s24 = ssub.s32 %s19, 1
      %s25 = ssub.s32 %s19, 2
      %s26 = sadd.s32 %s19, 1
      %s28 = sadd.s32 %s27, 1
      %p31 = scmp.eq.s32.totalorder %s19, 1
      %p32 = scmp.ne.s32.totalorder %s27, %s29
      %p33 = scmp.eq.s32.totalorder %s19, 0
      %p34 = por %p32, %p33
      %p35 = scmp.ne.s32.totalorder %s27, %s29
      %p36 = scmp.eq.s32.totalorder %s24, 1
      %p37 = por %p35, %p36
      %p38 = scmp.ne.s32.totalorder %s29, %s30
      %p39 = scmp.eq.s32.totalorder %s24, 0
      %p40 = por %p38, %p39
      %p41 = scmp.ne.s32.totalorder %s29, %s30
      %p42 = scmp.eq.s32.totalorder %s25, 1
      %p43 = por %p41, %p42
      %p45 = scmp.ne.s32.totalorder %s30, %s44
      %p46 = scmp.eq.s32.totalorder %s25, 0
      %p47 = por %p45, %p46
      %s49 = sadd.s32 %s48, 1
      %p52 = scmp.eq.s32.totalorder %s19, 1
      %p53 = scmp.ne.s32.totalorder %s48, %s50
      %p54 = scmp.eq.s32.totalorder %s19, 0
      %p55 = por %p53, %p54
      %p56 = scmp.ne.s32.totalorder %s48, %s50
      %p57 = scmp.eq.s32.totalorder %s24, 1
      %p58 = por %p56, %p57
      %p59 = scmp.ne.s32.totalorder %s50, %s51
      %p60 = scmp.eq.s32.totalorder %s24, 0
      %p61 = por %p59, %p60
      %p62 = scmp.ne.s32.totalorder %s50, %s51
      %p63 = scmp.eq.s32.totalorder %s25, 1
      %p64 = por %p62, %p63
      %p66 = scmp.ne.s32.totalorder %s51, %s65
      %p67 = scmp.eq.s32.totalorder %s25, 0
      %p68 = por %p66, %p67
      %s69 = ssub.s32 %s19, %s26
      %p70 = scmp.eq.s32.totalorder %s69, 0
      %s72 = sadd.s32 %s71, 1
      %s73 = scalar_select %p70, %s71, %s72
      %p76 = pneg %p70
      %p77 = scmp.eq.s32.totalorder %s19, 1
      %p78 = por %p76, %p77
      %p79 = scmp.ne.s32.totalorder %s71, %s74
      %p80 = scmp.eq.s32.totalorder %s19, 0
      %p81 = por %p79, %p80
      %p82 = scmp.ne.s32.totalorder %s71, %s74
      %p83 = scmp.eq.s32.totalorder %s24, 1
      %p84 = por %p82, %p83
      %p85 = scmp.ne.s32.totalorder %s74, %s75
      %p86 = scmp.eq.s32.totalorder %s24, 0
      %p87 = por %p85, %p86
      %p88 = scmp.ne.s32.totalorder %s74, %s75
      %p89 = scmp.eq.s32.totalorder %s25, 1
      %p90 = por %p88, %p89
      %p92 = scmp.ne.s32.totalorder %s75, %s91
      %p93 = scmp.eq.s32.totalorder %s25, 0
      %p94 = por %p92, %p93
      %s95 = ssub.s32 %s19, %s26
      %p96 = scmp.eq.s32.totalorder %s95, 0
      %s98 = sadd.s32 %s97, 1
      %s99 = scalar_select %p96, %s97, %s98
      %p102 = pneg %p96
      %p103 = scmp.eq.s32.totalorder %s19, 1
      %p104 = por %p102, %p103
      %p105 = scmp.ne.s32.totalorder %s97, %s100
      %p106 = scmp.eq.s32.totalorder %s19, 0
      %p107 = por %p105, %p106
      %p108 = scmp.ne.s32.totalorder %s97, %s100
      %p109 = scmp.eq.s32.totalorder %s24, 1
      %p110 = por %p108, %p109
      %p111 = scmp.ne.s32.totalorder %s100, %s101
      %p112 = scmp.eq.s32.totalorder %s24, 0
      %p113 = por %p111, %p112
      %p114 = scmp.ne.s32.totalorder %s100, %s101
      %p115 = scmp.eq.s32.totalorder %s25, 1
      %p116 = por %p114, %p115
      %p118 = scmp.ne.s32.totalorder %s101, %s117
      %p119 = scmp.eq.s32.totalorder %s25, 0
      %p120 = por %p118, %p119
      %s121 = ssub.s32 %s19, %s26
      %p122 = scmp.eq.s32.totalorder %s121, 0
      %s124 = sadd.s32 %s123, 1
      %s125 = scalar_select %p122, %s123, %s124
      %p128 = pneg %p122
      %p129 = scmp.eq.s32.totalorder %s19, 1
      %p130 = por %p128, %p129
      %p131 = scmp.ne.s32.totalorder %s123, %s126
      %p132 = scmp.eq.s32.totalorder %s19, 0
      %p133 = por %p131, %p132
      %p134 = scmp.ne.s32.totalorder %s123, %s126
      %p135 = scmp.eq.s32.totalorder %s24, 1
      %p136 = por %p134, %p135
      %p137 = scmp.ne.s32.totalorder %s126, %s127
      %p138 = scmp.eq.s32.totalorder %s24, 0
      %p139 = por %p137, %p138
      %p140 = scmp.ne.s32.totalorder %s126, %s127
      %p141 = scmp.eq.s32.totalorder %s25, 1
      %p142 = por %p140, %p141
      %p144 = scmp.ne.s32.totalorder %s127, %s143
      %p145 = scmp.eq.s32.totalorder %s25, 0
      %p146 = por %p144, %p145
      %s147 = ssub.s32 %s19, %s26
      %p148 = scmp.eq.s32.totalorder %s147, 0
      %s150 = sadd.s32 %s149, 1
      %s151 = scalar_select %p148, %s149, %s150
      %p154 = pneg %p148
      %p155 = scmp.eq.s32.totalorder %s19, 1
      %p156 = por %p154, %p155
      %p157 = scmp.ne.s32.totalorder %s149, %s152
      %p158 = scmp.eq.s32.totalorder %s19, 0
      %p159 = por %p157, %p158
      %p160 = scmp.ne.s32.totalorder %s149, %s152
      %p161 = scmp.eq.s32.totalorder %s24, 1
      %p162 = por %p160, %p161
      %p163 = scmp.ne.s32.totalorder %s152, %s153
      %p164 = scmp.eq.s32.totalorder %s24, 0
      %p165 = por %p163, %p164
      %p166 = scmp.ne.s32.totalorder %s152, %s153
      %p167 = scmp.eq.s32.totalorder %s25, 1
      %p168 = por %p166, %p167
      %p170 = scmp.ne.s32.totalorder %s153, %s169
      %p171 = scmp.eq.s32.totalorder %s25, 0
      %p172 = por %p170, %p171
      %s173 = ssub.s32 %s19, %s26
      %p174 = scmp.eq.s32.totalorder %s173, 0
      %s176 = sadd.s32 %s175, 1
      %s177 = scalar_select %p174, %s175, %s176
      %p180 = pneg %p174
      %p181 = scmp.eq.s32.totalorder %s19, 1
      %p182 = por %p180, %p181
      %p183 = scmp.ne.s32.totalorder %s175, %s178
      %p184 = scmp.eq.s32.totalorder %s19, 0
      %p185 = por %p183, %p184
      %p186 = scmp.ne.s32.totalorder %s175, %s178
      %p187 = scmp.eq.s32.totalorder %s24, 1
      %p188 = por %p186, %p187
      %p189 = scmp.ne.s32.totalorder %s178, %s179
      %p190 = scmp.eq.s32.totalorder %s24, 0
      %p191 = por %p189, %p190
      %p192 = scmp.ne.s32.totalorder %s178, %s179
      %p193 = scmp.eq.s32.totalorder %s25, 1
      %p194 = por %p192, %p193
      %p196 = scmp.ne.s32.totalorder %s179, %s195
      %p197 = scmp.eq.s32.totalorder %s25, 0
      %p198 = por %p196, %p197
      %s199 = ssub.s32 %s19, %s26
      %p200 = scmp.eq.s32.totalorder %s199, 0
      %s202 = sadd.s32 %s201, 1
      %s203 = scalar_select %p200, %s201, %s202
      %p206 = pneg %p200
      %p207 = scmp.eq.s32.totalorder %s19, 1
      %p208 = por %p206, %p207
      %p209 = scmp.ne.s32.totalorder %s201, %s204
      %p210 = scmp.eq.s32.totalorder %s19, 0
      %p211 = por %p209, %p210
      %p212 = scmp.ne.s32.totalorder %s201, %s204
      %p213 = scmp.eq.s32.totalorder %s24, 1
      %p214 = por %p212, %p213
      %p215 = scmp.ne.s32.totalorder %s204, %s205
      %p216 = scmp.eq.s32.totalorder %s24, 0
      %p217 = por %p215, %p216
      %p218 = scmp.ne.s32.totalorder %s204, %s205
      %p219 = scmp.eq.s32.totalorder %s25, 1
      %p220 = por %p218, %p219
      %p222 = scmp.ne.s32.totalorder %s205, %s221
      %p223 = scmp.eq.s32.totalorder %s25, 0
      %p224 = por %p222, %p223
      %s225 = ssub.s32 %s19, %s26
      %p226 = scmp.eq.s32.totalorder %s225, 0
      %s228 = sadd.s32 %s227, 1
      %s229 = scalar_select %p226, %s227, %s228
      %p232 = pneg %p226
      %p233 = scmp.eq.s32.totalorder %s19, 1
      %p234 = por %p232, %p233
      %p235 = scmp.ne.s32.totalorder %s227, %s230
      %p236 = scmp.eq.s32.totalorder %s19, 0
      %p237 = por %p235, %p236
      %p238 = scmp.ne.s32.totalorder %s227, %s230
      %p239 = scmp.eq.s32.totalorder %s24, 1
      %p240 = por %p238, %p239
      %p241 = scmp.ne.s32.totalorder %s230, %s231
      %p242 = scmp.eq.s32.totalorder %s24, 0
      %p243 = por %p241, %p242
      %p244 = scmp.ne.s32.totalorder %s230, %s231
      %p245 = scmp.eq.s32.totalorder %s25, 1
      %p246 = por %p244, %p245
      %p248 = scmp.ne.s32.totalorder %s231, %s247
      %p249 = scmp.eq.s32.totalorder %s25, 0
      %p250 = por %p248, %p249
      %s251 = ssub.s32 %s19, %s26
      %p252 = scmp.eq.s32.totalorder %s251, 0
      %s254 = sadd.s32 %s253, 1
      %s255 = scalar_select %p252, %s253, %s254
      %p258 = pneg %p252
      %p259 = scmp.eq.s32.totalorder %s19, 1
      %p260 = por %p258, %p259
      %p261 = scmp.ne.s32.totalorder %s253, %s256
      %p262 = scmp.eq.s32.totalorder %s19, 0
      %p263 = por %p261, %p262
      %p264 = scmp.ne.s32.totalorder %s253, %s256
      %p265 = scmp.eq.s32.totalorder %s24, 1
      %p266 = por %p264, %p265
      %p267 = scmp.ne.s32.totalorder %s256, %s257
      %p268 = scmp.eq.s32.totalorder %s24, 0
      %p269 = por %p267, %p268
      %p270 = scmp.ne.s32.totalorder %s256, %s257
      %p271 = scmp.eq.s32.totalorder %s25, 1
      %p272 = por %p270, %p271
      %p274 = scmp.ne.s32.totalorder %s257, %s273
      %p275 = scmp.eq.s32.totalorder %s25, 0
      %p276 = por %p274, %p275
      %s278 = sadd.s32 %s277, 1
      %p281 = scmp.eq.s32.totalorder %s19, 1
      %p282 = scmp.ne.s32.totalorder %s277, %s279
      %p283 = scmp.eq.s32.totalorder %s19, 0
      %p284 = por %p282, %p283
      %p285 = scmp.ne.s32.totalorder %s277, %s279
      %p286 = scmp.eq.s32.totalorder %s24, 1
      %p287 = por %p285, %p286
      %p288 = scmp.ne.s32.totalorder %s279, %s280
      %p289 = scmp.eq.s32.totalorder %s24, 0
      %p290 = por %p288, %p289
      %p291 = scmp.ne.s32.totalorder %s279, %s280
      %p292 = scmp.eq.s32.totalorder %s25, 1
      %p293 = por %p291, %p292
      %p295 = scmp.ne.s32.totalorder %s280, %s294
      %p296 = scmp.eq.s32.totalorder %s25, 0
      %p297 = por %p295, %p296
      %p298 = scmp.le.s32.totalorder 1, %s19
      %p299 = scmp.lt.s32.totalorder %s19, 3
      %p300 = pnand %p298, %p299
      %p301 = pneg %p300
      // Predicated region
      $region9: #{tpu_custom_call.1} parent=5 // pred_check
        _
      $region10: #{tpu_custom_call.1} parent=5 // pred_check_branch
        %303 = sbr.rel (%p300) target = $region12
      $region11: #{tpu_custom_call.1} parent=5 // pred_region
        %s304 = ssub.s32 %s19, 1
        // Predicated region
        $region13: #{tpu_custom_call.1} parent=11 // pred_check
          %p305 = pneg %p40
        $region14: #{tpu_custom_call.1} parent=11 // pred_check_branch
          %307 = sbr.rel (%p305) target = $region16
        $region15: #{tpu_custom_call.1} parent=11 // pred_region
          %309 = vsyncadd [#allocation3], 0
          %s311 = sshll.u32 %s0, 4
          %s312 = int_to_ptr.hbm [resolvable:$true] %s311
          %s313 = sshll.u32 [#allocation2], 4
          %s314 = int_to_ptr.vmem [resolvable:$true] %s313
          %316 = dma.hbm_to_vmem [thread:$0]  %s312, 128, %s314, [#allocation3]
        $region16: #{tpu_custom_call.1} parent=11 // pred_fallthru
          _
        // Predicated region
        $region17: #{tpu_custom_call.1} parent=11 // pred_check
          %p317 = pneg %p61
        $region18: #{tpu_custom_call.1} parent=11 // pred_check_branch
          %319 = sbr.rel (%p317) target = $region20
        $region19: #{tpu_custom_call.1} parent=11 // pred_region
          %321 = vsyncadd [#allocation6], 0
          %s323 = sshll.u32 %s1, 4
          %s324 = int_to_ptr.hbm [resolvable:$true] %s323
          %s325 = sshll.u32 [#allocation5], 4
          %s326 = int_to_ptr.vmem [resolvable:$true] %s325
          %328 = dma.hbm_to_vmem [thread:$0]  %s324, 128, %s326, [#allocation6]
        $region20: #{tpu_custom_call.1} parent=11 // pred_fallthru
          _
      $region12: #{tpu_custom_call.1} parent=5 // pred_fallthru
        _
      %p329 = scmp.lt.s32.totalorder %s19, 2
      // Predicated region
      $region21: #{tpu_custom_call.1} parent=5 // pred_check
        %p330 = pneg %p329
      $region22: #{tpu_custom_call.1} parent=5 // pred_check_branch
        %332 = sbr.rel (%p330) target = $region24
      $region23: #{tpu_custom_call.1} parent=5 // pred_region
        // Predicated region
        $region25: #{tpu_custom_call.1} parent=23 // pred_check
          %p333 = pneg %p81
        $region26: #{tpu_custom_call.1} parent=23 // pred_check_branch
          %335 = sbr.rel (%p333) target = $region28
        $region27: #{tpu_custom_call.1} parent=23 // pred_region
          %s336 = sand.u32 %s19, 1
          %s337 = scalar_lea.sflag [#allocation3], %s336
          %s338 = sand.u32 %s71, 1
          %s339 = smul.addr %s338, 128
          %s340 = scalar_lea.vmem [#allocation7], %s339
          %342 = vsyncadd %s337, 0
          %s343 = smul.addr %s19, 16
          %s344 = smul.addr %s343, 8
          %s345 = scalar_lea.hbm %s2, %s344
          %s346 = sshll.u32 %s345, 4
          %s347 = int_to_ptr.hbm [resolvable:$true] %s346
          %s348 = sshll.u32 %s340, 4
          %s349 = int_to_ptr.vmem [resolvable:$true] %s348
          %354 = dma.hbm_to_vmem [thread:$0]  %s347, 2048, %s349, %s337, 128, 128, 8
        $region28: #{tpu_custom_call.1} parent=23 // pred_fallthru
          _
        // Predicated region
        $region29: #{tpu_custom_call.1} parent=23 // pred_check
          %p355 = pneg %p107
        $region30: #{tpu_custom_call.1} parent=23 // pred_check_branch
          %357 = sbr.rel (%p355) target = $region32
        $region31: #{tpu_custom_call.1} parent=23 // pred_region
          %p358 = scmp.lt.s32.totalorder %s19, 1
          %s359 = scalar_select %p358, %s19, 1
          %s360 = scalar_lea.vmem %s3, %s359
        $region32: #{tpu_custom_call.1} parent=23 // pred_fallthru
          _
        // Predicated region
        $region33: #{tpu_custom_call.1} parent=23 // pred_check
          %p361 = pneg %p133
        $region34: #{tpu_custom_call.1} parent=23 // pred_check_branch
          %363 = sbr.rel (%p361) target = $region36
        $region35: #{tpu_custom_call.1} parent=23 // pred_region
          %s364 = sand.u32 %s19, 1
          %s365 = scalar_lea.sflag [#allocation3], %s364
          %s366 = sand.u32 %s123, 1
          %s367 = scalar_lea.vmem [#allocation8], %s366
          %369 = vsyncadd %s365, 0
          %s370 = scalar_lea.hbm %s4, %s19
          %s372 = sshll.u32 %s370, 4
          %s373 = int_to_ptr.hbm [resolvable:$true] %s372
          %s374 = sshll.u32 %s367, 4
          %s375 = int_to_ptr.vmem [resolvable:$true] %s374
          %377 = dma.hbm_to_vmem [thread:$0]  %s373, 16, %s375, %s365
        $region36: #{tpu_custom_call.1} parent=23 // pred_fallthru
          _
        // Predicated region
        $region37: #{tpu_custom_call.1} parent=23 // pred_check
          %p378 = pneg %p159
        $region38: #{tpu_custom_call.1} parent=23 // pred_check_branch
          %380 = sbr.rel (%p378) target = $region40
        $region39: #{tpu_custom_call.1} parent=23 // pred_region
          %s381 = sand.u32 %s19, 1
          %s382 = scalar_lea.sflag [#allocation3], %s381
          %s383 = sand.u32 %s149, 1
          %s384 = smul.addr %s383, 128
          %s385 = scalar_lea.vmem [#allocation9], %s384
          %387 = vsyncadd %s382, 0
          %s388 = smul.addr %s19, 16
          %s389 = smul.addr %s388, 8
          %s390 = scalar_lea.hbm %s5, %s389
          %s391 = sshll.u32 %s390, 4
          %s392 = int_to_ptr.hbm [resolvable:$true] %s391
          %s393 = sshll.u32 %s385, 4
          %s394 = int_to_ptr.vmem [resolvable:$true] %s393
          %399 = dma.hbm_to_vmem [thread:$0]  %s392, 2048, %s394, %s382, 128, 128, 8
        $region40: #{tpu_custom_call.1} parent=23 // pred_fallthru
          _
        // Predicated region
        $region41: #{tpu_custom_call.1} parent=23 // pred_check
          %p400 = pneg %p185
        $region42: #{tpu_custom_call.1} parent=23 // pred_check_branch
          %402 = sbr.rel (%p400) target = $region44
        $region43: #{tpu_custom_call.1} parent=23 // pred_region
          %p403 = scmp.lt.s32.totalorder %s19, 1
          %s404 = scalar_select %p403, %s19, 1
          %s405 = scalar_lea.vmem %s6, %s404
        $region44: #{tpu_custom_call.1} parent=23 // pred_fallthru
          _
        // Predicated region
        $region45: #{tpu_custom_call.1} parent=23 // pred_check
          %p406 = pneg %p211
        $region46: #{tpu_custom_call.1} parent=23 // pred_check_branch
          %408 = sbr.rel (%p406) target = $region48
        $region47: #{tpu_custom_call.1} parent=23 // pred_region
          %p409 = scmp.lt.s32.totalorder %s19, 1
          %s410 = scalar_select %p409, %s19, 1
          %s411 = scalar_lea.vmem %s7, %s410
        $region48: #{tpu_custom_call.1} parent=23 // pred_fallthru
          _
        // Predicated region
        $region49: #{tpu_custom_call.1} parent=23 // pred_check
          %p412 = pneg %p237
        $region50: #{tpu_custom_call.1} parent=23 // pred_check_branch
          %414 = sbr.rel (%p412) target = $region52
        $region51: #{tpu_custom_call.1} parent=23 // pred_region
          %s415 = sand.u32 %s19, 1
          %s416 = scalar_lea.sflag [#allocation3], %s415
          %s417 = sand.u32 %s227, 1
          %s418 = smul.addr %s417, 128
          %s419 = scalar_lea.vmem [#allocation10], %s418
          %421 = vsyncadd %s416, 0
          %s422 = smul.addr %s19, 16
          %s423 = smul.addr %s422, 8
          %s424 = scalar_lea.hbm %s8, %s423
          %s425 = sshll.u32 %s424, 4
          %s426 = int_to_ptr.hbm [resolvable:$true] %s425
          %s427 = sshll.u32 %s419, 4
          %s428 = int_to_ptr.vmem [resolvable:$true] %s427
          %433 = dma.hbm_to_vmem [thread:$0]  %s426, 2048, %s428, %s416, 128, 128, 8
        $region52: #{tpu_custom_call.1} parent=23 // pred_fallthru
          _
        // Predicated region
        $region53: #{tpu_custom_call.1} parent=23 // pred_check
          %p434 = pneg %p263
        $region54: #{tpu_custom_call.1} parent=23 // pred_check_branch
          %436 = sbr.rel (%p434) target = $region56
        $region55: #{tpu_custom_call.1} parent=23 // pred_region
          %p437 = scmp.lt.s32.totalorder %s19, 1
          %s438 = scalar_select %p437, %s19, 1
          %s439 = scalar_lea.vmem %s9, %s438
        $region56: #{tpu_custom_call.1} parent=23 // pred_fallthru
          _
      $region24: #{tpu_custom_call.1} parent=5 // pred_fallthru
        _
      %p440 = scmp.le.s32.totalorder 1, %s19
      %p441 = scmp.lt.s32.totalorder %s19, 3
      %p442 = pnand %p440, %p441
      %p443 = pneg %p442
      // Predicated region
      $region57: #{tpu_custom_call.1} parent=5 // pred_check
        _
      $region58: #{tpu_custom_call.1} parent=5 // pred_check_branch
        %445 = sbr.rel (%p442) target = $region60
      $region59: #{tpu_custom_call.1} parent=5 // pred_region
        %s446 = ssub.s32 %s19, 1
        // Predicated region
        $region61: #{tpu_custom_call.1} parent=59 // pred_check
          %p447 = pneg %p40
        $region62: #{tpu_custom_call.1} parent=59 // pred_check_branch
          %449 = sbr.rel (%p447) target = $region64
        $region63: #{tpu_custom_call.1} parent=59 // pred_region
          %451 = dma.done [#allocation3], 128
        $region64: #{tpu_custom_call.1} parent=59 // pred_fallthru
          _
        // Predicated region
        $region65: #{tpu_custom_call.1} parent=59 // pred_check
          %p452 = pneg %p61
        $region66: #{tpu_custom_call.1} parent=59 // pred_check_branch
          %454 = sbr.rel (%p452) target = $region68
        $region67: #{tpu_custom_call.1} parent=59 // pred_region
          %456 = dma.done [#allocation6], 128
        $region68: #{tpu_custom_call.1} parent=59 // pred_fallthru
          _
        %s457 = sand.u32 %s24, 1
        %s458 = scalar_lea.sflag [#allocation3], %s457
        %s459 = sand.u32 %s74, 1
        %s460 = smul.addr %s459, 128
        %s461 = scalar_lea.vmem [#allocation7], %s460
        // Predicated region
        $region69: #{tpu_custom_call.1} parent=59 // pred_check
          %p462 = pneg %p87
        $region70: #{tpu_custom_call.1} parent=59 // pred_check_branch
          %464 = sbr.rel (%p462) target = $region72
        $region71: #{tpu_custom_call.1} parent=59 // pred_region
          %466 = dma.done %s458, 2048
        $region72: #{tpu_custom_call.1} parent=59 // pred_fallthru
          _
        %s467 = sand.u32 %s24, 1
        %s468 = scalar_lea.sflag [#allocation3], %s467
        %s469 = sand.u32 %s126, 1
        %s470 = scalar_lea.vmem [#allocation8], %s469
        // Predicated region
        $region73: #{tpu_custom_call.1} parent=59 // pred_check
          %p471 = pneg %p139
        $region74: #{tpu_custom_call.1} parent=59 // pred_check_branch
          %473 = sbr.rel (%p471) target = $region76
        $region75: #{tpu_custom_call.1} parent=59 // pred_region
          %475 = dma.done %s468, 16
        $region76: #{tpu_custom_call.1} parent=59 // pred_fallthru
          _
        %s476 = sand.u32 %s24, 1
        %s477 = scalar_lea.sflag [#allocation3], %s476
        %s478 = sand.u32 %s152, 1
        %s479 = smul.addr %s478, 128
        %s480 = scalar_lea.vmem [#allocation9], %s479
        // Predicated region
        $region77: #{tpu_custom_call.1} parent=59 // pred_check
          %p481 = pneg %p165
        $region78: #{tpu_custom_call.1} parent=59 // pred_check_branch
          %483 = sbr.rel (%p481) target = $region80
        $region79: #{tpu_custom_call.1} parent=59 // pred_region
          %485 = dma.done %s477, 2048
        $region80: #{tpu_custom_call.1} parent=59 // pred_fallthru
          _
        %s486 = sand.u32 %s24, 1
        %s487 = scalar_lea.sflag [#allocation3], %s486
        %s488 = sand.u32 %s230, 1
        %s489 = smul.addr %s488, 128
        %s490 = scalar_lea.vmem [#allocation10], %s489
        // Predicated region
        $region81: #{tpu_custom_call.1} parent=59 // pred_check
          %p491 = pneg %p243
        $region82: #{tpu_custom_call.1} parent=59 // pred_check_branch
          %493 = sbr.rel (%p491) target = $region84
        $region83: #{tpu_custom_call.1} parent=59 // pred_region
          %495 = dma.done %s487, 2048
        $region84: #{tpu_custom_call.1} parent=59 // pred_fallthru
          _
        %p496 = pneg %p40
        %p497 = pneg %p37
        %p498 = pneg %p61
        %p499 = pneg %p58
        %s500 = sand.u32 %s24, 1
        %s501 = scalar_lea.sflag [#allocation3], %s500
        %s502 = sand.u32 %s74, 1
        %s503 = smul.addr %s502, 128
        %s504 = scalar_lea.vmem [#allocation7], %s503
        %p505 = pneg %p87
        %p506 = pneg %p84
        %p507 = scmp.lt.s32.totalorder %s24, 1
        %s508 = scalar_select %p507, %s24, 1
        %s509 = scalar_lea.vmem %s3, %s508
        %p510 = pneg %p113
        %p511 = pneg %p110
        %s512 = sand.u32 %s24, 1
        %s513 = scalar_lea.sflag [#allocation3], %s512
        %s514 = sand.u32 %s126, 1
        %s515 = scalar_lea.vmem [#allocation8], %s514
        %p516 = pneg %p139
        %p517 = pneg %p136
        %s518 = sand.u32 %s24, 1
        %s519 = scalar_lea.sflag [#allocation3], %s518
        %s520 = sand.u32 %s152, 1
        %s521 = smul.addr %s520, 128
        %s522 = scalar_lea.vmem [#allocation9], %s521
        %p523 = pneg %p165
        %p524 = pneg %p162
        %p525 = scmp.lt.s32.totalorder %s24, 1
        %s526 = scalar_select %p525, %s24, 1
        %s527 = scalar_lea.vmem %s6, %s526
        %p528 = pneg %p191
        %p529 = pneg %p188
        %p530 = scmp.lt.s32.totalorder %s24, 1
        %s531 = scalar_select %p530, %s24, 1
        %s532 = scalar_lea.vmem %s7, %s531
        %p533 = pneg %p217
        %p534 = pneg %p214
        %s535 = sand.u32 %s24, 1
        %s536 = scalar_lea.sflag [#allocation3], %s535
        %s537 = sand.u32 %s230, 1
        %s538 = smul.addr %s537, 128
        %s539 = scalar_lea.vmem [#allocation10], %s538
        %p540 = pneg %p243
        %p541 = pneg %p240
        %p542 = scmp.lt.s32.totalorder %s24, 1
        %s543 = scalar_select %p542, %s24, 1
        %s544 = scalar_lea.vmem %s9, %s543
        %p545 = pneg %p269
        %p546 = pneg %p266
        %p547 = pneg %p290
        %p548 = pneg %p287
        %p549 = scmp.lt.s32.totalorder %s24, 1
        %s550 = scalar_select %p549, %s24, 1
        %s551 = scalar_lea.vmem %s3, %s550
        %p552 = scmp.lt.s32.totalorder %s24, 1
        %s553 = scalar_select %p552, %s24, 1
        %s554 = scalar_lea.vmem %s6, %s553
        %p555 = scmp.lt.s32.totalorder %s24, 1
        %s556 = scalar_select %p555, %s24, 1
        %s557 = scalar_lea.vmem %s7, %s556
        %p558 = scmp.lt.s32.totalorder %s24, 1
        %s559 = scalar_select %p558, %s24, 1
        %s560 = scalar_lea.vmem %s9, %s559
        %p561 = scmp.eq.s32.totalorder %s24, 0
        // Predicated region
        $region85: #{tpu_custom_call.1} parent=59 // pred_check
          %p562 = pneg %p561
        $region86: #{tpu_custom_call.1} parent=59 // pred_check_branch
          %564 = sbr.rel (%p562) target = $region88
        $region87: #{tpu_custom_call.1} parent=59 // pred_region
          %v565 = vld [vmem:[#allocation5] sm:$0xff]
          %566 = vst [vmem:[#allocation11] sm:$0xff] %v565
        $region88: #{tpu_custom_call.1} parent=59 // pred_fallthru
          _
        %v567 = vld [vmem:[#allocation2] sm:$0xff]
        %v568 = vld [vmem:[%s461] sm:$0xff]
        %v569 = vld [vmem:[%s461 + $0x8] sm:$0xff]
        %v570 = vld [vmem:[%s461 + $0x10] sm:$0xff]
        %v571 = vld [vmem:[%s461 + $0x18] sm:$0xff]
        %v572 = vld [vmem:[%s461 + $0x20] sm:$0xff]
        %v573 = vld [vmem:[%s461 + $0x28] sm:$0xff]
        %v574 = vld [vmem:[%s461 + $0x30] sm:$0xff]
        %v575 = vld [vmem:[%s461 + $0x38] sm:$0xff]
        %v576 = vld [vmem:[%s461 + $0x40] sm:$0xff]
        %v577 = vld [vmem:[%s461 + $0x48] sm:$0xff]
        %v578 = vld [vmem:[%s461 + $0x50] sm:$0xff]
        %v579 = vld [vmem:[%s461 + $0x58] sm:$0xff]
        %v580 = vld [vmem:[%s461 + $0x60] sm:$0xff]
        %v581 = vld [vmem:[%s461 + $0x68] sm:$0xff]
        %v582 = vld [vmem:[%s461 + $0x70] sm:$0xff]
        %v583 = vld [vmem:[%s461 + $0x78] sm:$0xff]
        %584 = vmatpush.msra.mxu0 %v583
        %585 = vmatpush.msra.mxu0 %v582
        %586 = vmatpush.msra.mxu0 %v581
        %587 = vmatpush.msra.mxu0 %v580
        %588 = vmatpush.msra.mxu0 %v579
        %589 = vmatpush.msra.mxu0 %v578
        %590 = vmatpush.msra.mxu0 %v577
        %591 = vmatpush.msra.mxu0 %v576
        %592 = vmatpush.msra.mxu0 %v575
        %593 = vmatpush.msra.mxu0 %v574
        %594 = vmatpush.msra.mxu0 %v573
        %595 = vmatpush.msra.mxu0 %v572
        %596 = vmatpush.msra.mxu0 %v571
        %597 = vmatpush.msra.mxu0 %v570
        %598 = vmatpush.msra.mxu0 %v569
        %599 = vmatpush.msra.mxu0 %v568
        %600 = vmatmul.f32.gmra.mxu0 %v567
        %v601 = vpop.f32.mrf.mxu0
        %v602 = vadd.f32 0.0, %v601
        %603 = vdwg.mxu0
        %v604 = vrot.slane %v602, 4
        %v605 = vadd.f32 %v602, %v604
        %v606 = vrot.slane %v605, 2
        %v607 = vadd.f32 %v605, %v606
        %v608 = vrot.slane %v607, 1
        %v609 = vadd.f32 %v607, %v608
        %v610 = vmul.f32 %v609, 0.125
        %v611 = vmul.f32 %v602, %v602
        %v612 = vrot.slane %v611, 4
        %v613 = vadd.f32 %v611, %v612
        %v614 = vrot.slane %v613, 2
        %v615 = vadd.f32 %v613, %v614
        %v616 = vrot.slane %v615, 1
        %v617 = vadd.f32 %v615, %v616
        %v618 = vmul.f32 %v617, 0.125
        %v619 = vmul.f32 %v610, %v610
        %v620 = vsub.f32 %v618, %v619
        %v621 = vmax.f32 %v620, 0.0
        %v622 = vld [vmem:[%s551] sm:$0x1]
        %v623 = vadd.f32 %v621, 1e-05
        %v624 = vrsqrt.pop %v623
        %v625 = vmul.f32 %v624, %v623
        %v626 = vmul.f32 %v625, %v624
        %v627 = vmul.f32 0.5, %v626
        %v628 = vsub.f32 1.5, %v627
        %v629 = vmul.f32 %v624, %v628
        %vm630 = vweird.f32 %v623
        %vm631 = vweird.f32 %v624
        %vm632 = vmor %vm630, %vm631
        %v633 = vsel %vm632, %v624, %v629
        %v634 = vmul.f32 %v622, %v633
        %v636 = vperm.slane %v634, 0
        %v638 = vmul.f32 %v602, %v636
        %v639 = vld [vmem:[%s470] sm:$0x1]
        %v640 = vmul.f32 %v610, %v634
        %v641 = vsub.f32 %v639, %v640
        %v643 = vperm.slane %v641, 0
        %v645 = vadd.f32 %v638, %v643
        %v646 = vmax.f32 %v645, 0.0
        %v647 = vld [vmem:[%s480] sm:$0xff]
        %v648 = vld [vmem:[%s480 + $0x8] sm:$0xff]
        %v649 = vld [vmem:[%s480 + $0x10] sm:$0xff]
        %v650 = vld [vmem:[%s480 + $0x18] sm:$0xff]
        %v651 = vld [vmem:[%s480 + $0x20] sm:$0xff]
        %v652 = vld [vmem:[%s480 + $0x28] sm:$0xff]
        %v653 = vld [vmem:[%s480 + $0x30] sm:$0xff]
        %v654 = vld [vmem:[%s480 + $0x38] sm:$0xff]
        %v655 = vld [vmem:[%s480 + $0x40] sm:$0xff]
        %v656 = vld [vmem:[%s480 + $0x48] sm:$0xff]
        %v657 = vld [vmem:[%s480 + $0x50] sm:$0xff]
        %v658 = vld [vmem:[%s480 + $0x58] sm:$0xff]
        %v659 = vld [vmem:[%s480 + $0x60] sm:$0xff]
        %v660 = vld [vmem:[%s480 + $0x68] sm:$0xff]
        %v661 = vld [vmem:[%s480 + $0x70] sm:$0xff]
        %v662 = vld [vmem:[%s480 + $0x78] sm:$0xff]
        %663 = vmatpush.msra.mxu0 %v662
        %664 = vmatpush.msra.mxu0 %v661
        %665 = vmatpush.msra.mxu0 %v660
        %666 = vmatpush.msra.mxu0 %v659
        %667 = vmatpush.msra.mxu0 %v658
        %668 = vmatpush.msra.mxu0 %v657
        %669 = vmatpush.msra.mxu0 %v656
        %670 = vmatpush.msra.mxu0 %v655
        %671 = vmatpush.msra.mxu0 %v654
        %672 = vmatpush.msra.mxu0 %v653
        %673 = vmatpush.msra.mxu0 %v652
        %674 = vmatpush.msra.mxu0 %v651
        %675 = vmatpush.msra.mxu0 %v650
        %676 = vmatpush.msra.mxu0 %v649
        %677 = vmatpush.msra.mxu0 %v648
        %678 = vmatpush.msra.mxu0 %v647
        %679 = vmatmul.f32.gmra.mxu0 %v646
        %v680 = vpop.f32.mrf.mxu0
        %v681 = vadd.f32 0.0, %v680
        %682 = vdwg.mxu0
        %v683 = vrot.slane %v681, 4
        %v684 = vadd.f32 %v681, %v683
        %v685 = vrot.slane %v684, 2
        %v686 = vadd.f32 %v684, %v685
        %v687 = vrot.slane %v686, 1
        %v688 = vadd.f32 %v686, %v687
        %v689 = vmul.f32 %v688, 0.125
        %v690 = vmul.f32 %v681, %v681
        %v691 = vrot.slane %v690, 4
        %v692 = vadd.f32 %v690, %v691
        %v693 = vrot.slane %v692, 2
        %v694 = vadd.f32 %v692, %v693
        %v695 = vrot.slane %v694, 1
        %v696 = vadd.f32 %v694, %v695
        %v697 = vmul.f32 %v696, 0.125
        %v698 = vmul.f32 %v689, %v689
        %v699 = vsub.f32 %v697, %v698
        %v700 = vmax.f32 %v699, 0.0
        %v701 = vld [vmem:[%s554] sm:$0x1]
        %v702 = vadd.f32 %v700, 1e-05
        %v703 = vrsqrt.pop %v702
        %v704 = vmul.f32 %v703, %v702
        %v705 = vmul.f32 %v704, %v703
        %v706 = vmul.f32 0.5, %v705
        %v707 = vsub.f32 1.5, %v706
        %v708 = vmul.f32 %v703, %v707
        %vm709 = vweird.f32 %v702
        %vm710 = vweird.f32 %v703
        %vm711 = vmor %vm709, %vm710
        %v712 = vsel %vm711, %v703, %v708
        %v713 = vmul.f32 %v701, %v712
        %v715 = vperm.slane %v713, 0
        %v717 = vmul.f32 %v681, %v715
        %v718 = vld [vmem:[%s557] sm:$0x1]
        %v719 = vmul.f32 %v689, %v713
        %v720 = vsub.f32 %v718, %v719
        %v722 = vperm.slane %v720, 0
        %v724 = vadd.f32 %v717, %v722
        %v725 = vmax.f32 %v724, 0.0
        %v726 = vld [vmem:[%s490] sm:$0xff]
        %v727 = vld [vmem:[%s490 + $0x8] sm:$0xff]
        %v728 = vld [vmem:[%s490 + $0x10] sm:$0xff]
        %v729 = vld [vmem:[%s490 + $0x18] sm:$0xff]
        %v730 = vld [vmem:[%s490 + $0x20] sm:$0xff]
        %v731 = vld [vmem:[%s490 + $0x28] sm:$0xff]
        %v732 = vld [vmem:[%s490 + $0x30] sm:$0xff]
        %v733 = vld [vmem:[%s490 + $0x38] sm:$0xff]
        %v734 = vld [vmem:[%s490 + $0x40] sm:$0xff]
        %v735 = vld [vmem:[%s490 + $0x48] sm:$0xff]
        %v736 = vld [vmem:[%s490 + $0x50] sm:$0xff]
        %v737 = vld [vmem:[%s490 + $0x58] sm:$0xff]
        %v738 = vld [vmem:[%s490 + $0x60] sm:$0xff]
        %v739 = vld [vmem:[%s490 + $0x68] sm:$0xff]
        %v740 = vld [vmem:[%s490 + $0x70] sm:$0xff]
        %v741 = vld [vmem:[%s490 + $0x78] sm:$0xff]
        %v742 = vld [vmem:[%s560] sm:$0x1]
        %v744 = vperm.slane %v742, 0
        %746 = vmatpush.msra.mxu0 %v741
        %747 = vmatpush.msra.mxu0 %v740
        %748 = vmatpush.msra.mxu0 %v739
        %749 = vmatpush.msra.mxu0 %v738
        %750 = vmatpush.msra.mxu0 %v737
        %751 = vmatpush.msra.mxu0 %v736
        %752 = vmatpush.msra.mxu0 %v735
        %753 = vmatpush.msra.mxu0 %v734
        %754 = vmatpush.msra.mxu0 %v733
        %755 = vmatpush.msra.mxu0 %v732
        %756 = vmatpush.msra.mxu0 %v731
        %757 = vmatpush.msra.mxu0 %v730
        %758 = vmatpush.msra.mxu0 %v729
        %759 = vmatpush.msra.mxu0 %v728
        %760 = vmatpush.msra.mxu0 %v727
        %761 = vmatpush.msra.mxu0 %v726
        %762 = vmatmul.f32.gmra.mxu0 %v725
        %v763 = vpop.f32.mrf.mxu0
        %v764 = vadd.f32 %v744, %v763
        %765 = vdwg.mxu0
        %v766 = vld [vmem:[#allocation11] sm:$0xff]
        %v767 = vadd.f32 %v766, %v764
        %768 = vst [vmem:[#allocation11] sm:$0xff] %v767
        // Predicated region
        $region89: #{tpu_custom_call.1} parent=59 // pred_check
          %p769 = pneg %p287
        $region90: #{tpu_custom_call.1} parent=59 // pred_check_branch
          %771 = sbr.rel (%p769) target = $region92
        $region91: #{tpu_custom_call.1} parent=59 // pred_region
          %773 = vsyncadd [#allocation4], 0
          %s775 = sshll.u32 [#allocation11], 4
          %s776 = int_to_ptr.vmem [resolvable:$true] %s775
          %s777 = sshll.u32 %s10, 4
          %s778 = int_to_ptr.hbm [resolvable:$true] %s777
          %780 = dma.vmem_to_hbm [thread:$0]  %s776, 128, %s778, [#allocation4]
        $region92: #{tpu_custom_call.1} parent=59 // pred_fallthru
          _
        // Predicated region
        $region93: #{tpu_custom_call.1} parent=59 // pred_check
          %p781 = pneg %p287
        $region94: #{tpu_custom_call.1} parent=59 // pred_check_branch
          %783 = sbr.rel (%p781) target = $region96
        $region95: #{tpu_custom_call.1} parent=59 // pred_region
          %785 = dma.done [#allocation4], 128
        $region96: #{tpu_custom_call.1} parent=59 // pred_fallthru
          _
      $region60: #{tpu_custom_call.1} parent=5 // pred_fallthru
        _
      %p786 = scmp.le.s32.totalorder 2, %s19
      // Predicated region
      $region97: #{tpu_custom_call.1} parent=5 // pred_check
        %p787 = pneg %p786
      $region98: #{tpu_custom_call.1} parent=5 // pred_check_branch
        %789 = sbr.rel (%p787) target = $region100
      $region99: #{tpu_custom_call.1} parent=5 // pred_region
        %s790 = ssub.s32 %s19, 2
      $region100: #{tpu_custom_call.1} parent=5 // pred_fallthru
        _
    $region6: #{tpu_custom_call.1} parent=1 // loop_footer
      %s23 = sadd.s32 1, %s19
    $region7: #{tpu_custom_call.1} parent=1 // loop_footer_branch
      %18 = sbr.rel target = $region3
    $region8: #{tpu_custom_call.1} parent=1 // loop_exit
      _
    %791 = vsyncpa [#allocation3], 1
    %s792 = scalar_lea.sflag [#allocation3], 1
    %793 = vsyncpa %s792, 1
    %794 = vsyncpa [#allocation6], 1
    %795 = vsyncpa [#allocation4], 1
    %s796 = scalar_lea.sflag [#allocation4], 1
    %797 = vsyncpa %s796, 1

</llo_original>
